<compile_context>
chip_gen: v5e
topology: v5e:2x2
jax: 0.10.0
libtpu: 0.0.40
codegen_flags: <defaults>
</compile_context>

<pallas_src>
import jax
import jax.numpy as jnp
from jax import lax
from jax.experimental import pallas as pl
from jax.experimental.pallas import tpu as pltpu

# ---- model / problem sizes (small, consistent with the module) ----
V = 128    # num_words (vocabulary size); lane-aligned
D = 32     # embed_dim
B = 2      # batch
L = 8      # tokens per example
N = B * L  # flattened tokens (16: sublane-aligned multiple of 8)


def skipgram_kernel(ids_ref, w_ref, wt_ref, out_ref):
    """Whole problem in one shot.

    ids_ref: VMEM (N, 1) int32   -- flattened token ids
    w_ref:   VMEM (V, D) float32 -- shared weight, row-major for the gather
    wt_ref:  VMEM (D, V) float32 -- same weight, pre-transposed for projection
    out_ref: VMEM (N, V) float32 -- logits (token-major, vocab on lanes)
    """
    ids = ids_ref[...]                                   # (N, 1) int32
    w = w_ref[...]                                       # (V, D) f32
    wt = wt_ref[...]                                     # (D, V) f32 (lane-dense)

    # Embedding lookup as a one-hot matmul on the MXU: onehot @ W == W[ids].
    # (Out-of-range / negative ids match nothing -> zero rows, unlike PyTorch
    #  which would raise; acceptable since ids are generated in [0, V).)
    onehot = (lax.broadcasted_iota(jnp.int32, (N, V), 1) == ids).astype(w.dtype)
    emb = jnp.dot(onehot, w, preferred_element_type=jnp.float32)      # (N, D)

    # Tied-weight projection: logits = emb @ W^T, fed as emb @ Wt so the MXU
    # sees a lane-dense (D, V) RHS and no relayout is needed.
    out_ref[...] = jnp.dot(emb, wt, preferred_element_type=jnp.float32)  # (N, V)


def skipgram_forward(x_ids, weight):
    """x_ids: (B, L) int token ids; weight: (V, D) float32. Returns (B, L, V) logits."""
    ids_flat = x_ids.reshape(-1, 1).astype(jnp.int32)    # (N, 1)
    weight_t = weight.T                                  # (D, V), lane-dense RHS

    out_flat = pl.pallas_call(
        skipgram_kernel,
        out_shape=jax.ShapeDtypeStruct((N, V), jnp.float32),
        # No grid: single step, full arrays resident in VMEM, no double-buffering.
        in_specs=[
            pl.BlockSpec(memory_space=pltpu.MemorySpace.VMEM),  # ids (N, 1)
            pl.BlockSpec(memory_space=pltpu.MemorySpace.VMEM),  # W   (V, D)
            pl.BlockSpec(memory_space=pltpu.MemorySpace.VMEM),  # Wt  (D, V)
        ],
        out_specs=pl.BlockSpec(memory_space=pltpu.MemorySpace.VMEM),
    )(ids_flat, weight, weight_t)

    # TODO(synk): at realistic sizes (V >> 128, N >> 16):
    #   - grid over (token tile, vocab tile) with the token axis "parallel"
    #     (2 TCs on v7x) and the vocab axis innermost + "arbitrary";
    #   - hoist the gather: compute emb once per token tile under
    #     @pl.when(vocab_id == 0) into a small (tile_N, D) VMEM scratch;
    #   - drop the one-hot for a scalar-prefetched id gather
    #     (PrefetchScalarGridSpec(num_scalar_prefetch=1) + pl.Element row map);
    #   - size vocab tiles so tile_V*D*4B*2 buffers fits the scoped VMEM limit
    #     (v7x: 64 MiB physical, 32 MiB default scope) or raise vmem_limit_bytes;
    #   - batch N >= 256 (v6e/v7x) / >= 128 (v5e) to fill the MXU rows, and use
    #     bf16 operands with f32 accumulation.
    return out_flat.reshape(B, L, V)


if __name__ == "__main__":
    key = jax.random.PRNGKey(0)
    k_w, k_x = jax.random.split(key)

    # nn.Embedding default init ~ N(0, 1); deterministic synthetic weights.
    weight = jax.random.normal(k_w, (V, D), dtype=jnp.float32)
    x_ids = jax.random.randint(k_x, (B, L), 0, V, dtype=jnp.int32)

    logits = skipgram_forward(x_ids, weight)
    logits = jax.block_until_ready(logits)

    # Reference check (pure JAX): gather then tied projection.
    ref = jnp.take(weight, x_ids, axis=0) @ weight.T
    assert logits.shape == (B, L, V)
    assert jnp.allclose(logits, ref, atol=1e-5, rtol=1e-5)

    print("KERNEL_OK")
</pallas_src>

<mosaic_0001>
module attributes {stable_mosaic.version = 11 : i64} {
  func.func @skipgram_kernel(%arg0: memref<16x1xi32, #tpu.memory_space<vmem>>, %arg1: memref<128x32xf32, #tpu.memory_space<vmem>>, %arg2: memref<32x128xf32, #tpu.memory_space<vmem>>, %arg3: memref<16x128xf32, #tpu.memory_space<vmem>>) attributes {dimension_semantics = [], scalar_prefetch = 0 : i64, scratch_operands = 0 : i64, tpu.core_type = #tpu.core_type<tc>} {
    %c0 = arith.constant 0 : index
    %c0_0 = arith.constant 0 : index
    %0 = vector.load %arg0[%c0, %c0_0] : memref<16x1xi32, #tpu.memory_space<vmem>>, vector<16x1xi32>
    %c0_1 = arith.constant 0 : index
    %c0_2 = arith.constant 0 : index
    %1 = vector.load %arg1[%c0_1, %c0_2] : memref<128x32xf32, #tpu.memory_space<vmem>>, vector<128x32xf32>
    %c0_3 = arith.constant 0 : index
    %c0_4 = arith.constant 0 : index
    %2 = vector.load %arg2[%c0_3, %c0_4] : memref<32x128xf32, #tpu.memory_space<vmem>>, vector<32x128xf32>
    %3 = tpu.iota {dimensions = array<i32: 1>} : vector<16x128xi32>
    %4 = vector.broadcast %0 : vector<16x1xi32> to vector<16x128xi32>
    %5 = arith.cmpi eq, %3, %4 : vector<16x128xi32>
    %6 = arith.extui %5 : vector<16x128xi1> to vector<16x128xi32>
    %7 = arith.sitofp %6 : vector<16x128xi32> to vector<16x128xf32>
    %cst = arith.constant dense<0.000000e+00> : vector<16x32xf32>
    %8 = tpu.matmul %7, %1, %cst {dimension_numbers = #tpu.dot_dimension_numbers<[1], [0], [0], [1], [0, 0, 1, 1], [], []>} : vector<16x128xf32>, vector<128x32xf32>, vector<16x32xf32> -> vector<16x32xf32>
    %cst_5 = arith.constant dense<0.000000e+00> : vector<16x128xf32>
    %9 = tpu.matmul %8, %2, %cst_5 {dimension_numbers = #tpu.dot_dimension_numbers<[1], [0], [0], [1], [0, 0, 1, 1], [], []>} : vector<16x32xf32>, vector<32x128xf32>, vector<16x128xf32> -> vector<16x128xf32>
    %c0_6 = arith.constant 0 : index
    %c0_7 = arith.constant 0 : index
    %10 = vector.load %arg3[%c0_6, %c0_7] : memref<16x128xf32, #tpu.memory_space<vmem>>, vector<16x128xf32>
    tpu.vector_store %arg3[%c0_6, %c0_7], %9 {strides = array<i32>} : memref<16x128xf32, #tpu.memory_space<vmem>>, vector<16x128xf32>,
    return
  }
}

</mosaic_0001>

<llo_original>
// kernel: tpu_custom_call.1
$region0: #{tpu_custom_call.1}
  #allocation0 [shape = 'u32[]', space=smem, size = 0x4, offset = 0x4, fixed_abs, tag = 'smem constant byte address 0x4 - core index']
  #allocation1 [shape = 'u32[72,128]{1,0:T(1,128)}', space=vmem, size = 0x9000, scoped, tag = 'internal scratch']
  %s0 = inlined_call_operand.vmem [shape: s32[16,1], index: 0, kind: input, shape index: {}]
  %s1 = inlined_call_operand.vmem [shape: f32[128,32], index: 1, kind: input, shape index: {}]
  %s2 = inlined_call_operand.vmem [shape: f32[32,128], index: 2, kind: input, shape index: {}]
  %s3 = inlined_call_operand.hbm [shape: f32[16,128], index: 3, kind: output, shape index: {}]
  %s4 = sld [smem:[#allocation0]]
  $region22: #{tpu_custom_call.1} parent=0
    _
  %s6 = ssub.s32 1, %s4
  %s7 = scalar_select 0, %s6, %s4
  $region1: #{tpu_custom_call.1} parent=0
    #allocation2 [shape = 'u8[8192]{0}', space=vmem, size = 0x2000, scoped, tag = 'output window, operand 0, single buffered']
    #allocation3 [shape = 's32[1]{0}', space=sflag, size = 0x4, scoped, tag = 'scoped memory for tpu_custom_call.1']
    %8 = vsyncpa [#allocation3], 0
    // Predicated region
    $region2: #{tpu_custom_call.1} parent=1 // pred_check
      _
    $region3: #{tpu_custom_call.1} parent=1 // pred_check_branch
      %10 = sbr.rel (0) target = $region5
    $region4: #{tpu_custom_call.1} parent=1 // pred_region
      _
    $region5: #{tpu_custom_call.1} parent=1 // pred_fallthru
      _
    // Predicated region
    $region6: #{tpu_custom_call.1} parent=1 // pred_check
      _
    $region7: #{tpu_custom_call.1} parent=1 // pred_check_branch
      %12 = sbr.rel (0) target = $region9
    $region8: #{tpu_custom_call.1} parent=1 // pred_region
      _
    $region9: #{tpu_custom_call.1} parent=1 // pred_fallthru
      _
    // Predicated region
    $region10: #{tpu_custom_call.1} parent=1 // pred_check
      _
    $region11: #{tpu_custom_call.1} parent=1 // pred_check_branch
      %14 = sbr.rel (0) target = $region13
    $region12: #{tpu_custom_call.1} parent=1 // pred_region
      _
    $region13: #{tpu_custom_call.1} parent=1 // pred_fallthru
      _
    %v15 = vld [vmem:[%s0] sm:$0xff]
    %v16 = vld [vmem:[%s0 + $0x8] sm:$0xff]
    %v17 = vld [vmem:[%s1] sm:$0xff]
    %v18 = vld [vmem:[%s1 + $0x8] sm:$0xff]
    %v19 = vld [vmem:[%s1 + $0x10] sm:$0xff]
    %v20 = vld [vmem:[%s1 + $0x18] sm:$0xff]
    %v21 = vld [vmem:[%s1 + $0x20] sm:$0xff]
    %v22 = vld [vmem:[%s1 + $0x28] sm:$0xff]
    %v23 = vld [vmem:[%s1 + $0x30] sm:$0xff]
    %v24 = vld [vmem:[%s1 + $0x38] sm:$0xff]
    %v25 = vld [vmem:[%s1 + $0x40] sm:$0xff]
    %v26 = vld [vmem:[%s1 + $0x48] sm:$0xff]
    %v27 = vld [vmem:[%s1 + $0x50] sm:$0xff]
    %v28 = vld [vmem:[%s1 + $0x58] sm:$0xff]
    %v29 = vld [vmem:[%s1 + $0x60] sm:$0xff]
    %v30 = vld [vmem:[%s1 + $0x68] sm:$0xff]
    %v31 = vld [vmem:[%s1 + $0x70] sm:$0xff]
    %v32 = vld [vmem:[%s1 + $0x78] sm:$0xff]
    %v33 = vld [vmem:[%s2] sm:$0xff]
    %v34 = vld [vmem:[%s2 + $0x8] sm:$0xff]
    %v35 = vld [vmem:[%s2 + $0x10] sm:$0xff]
    %v36 = vld [vmem:[%s2 + $0x18] sm:$0xff]
    %v37 = vlaneseq
    %v38 = vand.u32 %v37, 127
    %39 = vset.pattern.permute.xlu0 0
    %40 = vperm.xlu0 %39, %v15
    %v41 = vpop.permute.xlu0 %40
    %42 = vset.pattern.permute.xlu0 0
    %43 = vperm.xlu0 %42, %v16
    %v44 = vpop.permute.xlu0 %43
    %vm45 = vcmp.eq.s32.totalorder %v38, %v41
    %vm46 = vcmp.eq.s32.totalorder %v38, %v44
    %v47 = vsel %vm45, 1, 0
    %v48 = vsel %vm46, 1, 0
    %v49 = vcvt.s32.f32 %v47
    %v50 = vcvt.s32.f32 %v48
    %51 = vmatpush.msra.mxu0 %v32
    %52 = vmatpush.msra.mxu0 %v31
    %53 = vmatpush.msra.mxu0 %v30
    %54 = vmatpush.msra.mxu0 %v29
    %55 = vmatpush.msra.mxu0 %v28
    %56 = vmatpush.msra.mxu0 %v27
    %57 = vmatpush.msra.mxu0 %v26
    %58 = vmatpush.msra.mxu0 %v25
    %59 = vmatpush.msra.mxu0 %v24
    %60 = vmatpush.msra.mxu0 %v23
    %61 = vmatpush.msra.mxu0 %v22
    %62 = vmatpush.msra.mxu0 %v21
    %63 = vmatpush.msra.mxu0 %v20
    %64 = vmatpush.msra.mxu0 %v19
    %65 = vmatpush.msra.mxu0 %v18
    %66 = vmatpush.msra.mxu0 %v17
    %67 = vmatmul.f32.gmra.mxu0 %v49
    %v68 = vpop.f32.mrf.mxu0
    %v69 = vadd.f32 0.0, %v68
    %70 = vmatmul.f32.gmra.mxu0 %v50
    %v71 = vpop.f32.mrf.mxu0
    %v72 = vadd.f32 0.0, %v71
    %73 = vdwg.mxu0
    %vm74 = vcmask 261120
    %v76 = vsel %vm74, %v69, 0
    %v79 = vsel %vm74, %v72, 0
    %81 = vmatpush.msra.mxu0 0.0
    %82 = vmatpush.msra.mxu0 0.0
    %83 = vmatpush.msra.mxu0 0.0
    %84 = vmatpush.msra.mxu0 0.0
    %85 = vmatpush.msra.mxu0 0.0
    %86 = vmatpush.msra.mxu0 0.0
    %87 = vmatpush.msra.mxu0 0.0
    %88 = vmatpush.msra.mxu0 0.0
    %89 = vmatpush.msra.mxu0 0.0
    %90 = vmatpush.msra.mxu0 0.0
    %91 = vmatpush.msra.mxu0 0.0
    %92 = vmatpush.msra.mxu0 0.0
    %93 = vmatpush.msra.mxu0 %v36
    %94 = vmatpush.msra.mxu0 %v35
    %95 = vmatpush.msra.mxu0 %v34
    %96 = vmatpush.msra.mxu0 %v33
    %97 = vmatmul.f32.gmra.mxu0 %v76
    %v98 = vpop.f32.mrf.mxu0
    %v99 = vadd.f32 0.0, %v98
    %100 = vmatmul.f32.gmra.mxu0 %v79
    %v101 = vpop.f32.mrf.mxu0
    %v102 = vadd.f32 0.0, %v101
    %103 = vdwg.mxu0
    %104 = vst [vmem:[#allocation2] sm:$0xff] %v99
    %105 = vst [vmem:[#allocation2 + $0x8] sm:$0xff] %v102
    // Predicated region
    $region14: #{tpu_custom_call.1} parent=1 // pred_check
      _
    $region15: #{tpu_custom_call.1} parent=1 // pred_check_branch
      %107 = sbr.rel (0) target = $region17
    $region16: #{tpu_custom_call.1} parent=1 // pred_region
      %109 = vsyncadd [#allocation3], 0
      %s110 = sshll.u32 [#allocation2], 4
      %s111 = int_to_ptr.vmem [resolvable:$true] %s110
      %s112 = sshll.u32 %s3, 4
      %s113 = int_to_ptr.hbm [resolvable:$true] %s112
      %118 = dma.vmem_to_hbm [thread:$0]  %s111, 256, %s113, [#allocation3], 128, 128, 8
    $region17: #{tpu_custom_call.1} parent=1 // pred_fallthru
      _
    // Predicated region
    $region18: #{tpu_custom_call.1} parent=1 // pred_check
      _
    $region19: #{tpu_custom_call.1} parent=1 // pred_check_branch
      %120 = sbr.rel (0) target = $region21
    $region20: #{tpu_custom_call.1} parent=1 // pred_region
      %122 = dma.done [#allocation3], 256
    $region21: #{tpu_custom_call.1} parent=1 // pred_fallthru
      _
    %123 = vsyncpa [#allocation3], 1

</llo_original>
